<compile_context>
chip_gen: v5e
topology: v5e:2x2
jax: 0.10.0
libtpu: 0.0.40
codegen_flags: <defaults>
</compile_context>

<pallas_src>
import functools

import jax
import jax.numpy as jnp
from jax.experimental import pallas as pl
from jax.experimental.pallas import tpu as pltpu


def _round_up(x: int, m: int) -> int:
    return ((x + m - 1) // m) * m


def _fused_mlp_kernel(*refs, n_layers: int, pack: int):
    """y = relu(...relu(x@W0+b0)...)@W_{L-1} + b_{L-1} on one batch tile.

    refs = (x, W0, b0, ..., W_{L-1}, b_{L-1}, out[, h_scratch])
    Weights/biases use a grid-invariant index_map so they are DMA'd once and
    stay VMEM-resident; intermediates live in vregs/VMEM and never touch HBM.
    """
    x_ref = refs[0]
    if pack > 1:
        o_ref, h_sc = refs[-2], refs[-1]
    else:
        o_ref = refs[-1]

    h = x_ref[...]
    for i in range(n_layers):
        w_ref = refs[1 + 2 * i]
        b_ref = refs[2 + 2 * i]
        # Weight-dtype (bf16) inputs on the MXU, f32 accumulation.
        y = jnp.dot(h.astype(w_ref.dtype), w_ref[...],
                    preferred_element_type=jnp.float32)
        y = y + b_ref[...].astype(jnp.float32)   # (1, out) broadcasts over rows
        if i != n_layers - 1:
            y = jnp.maximum(y, 0.0)
        h = y

    if pack == 1:
        o_ref[...] = h.astype(o_ref.dtype)
    else:
        # Lane-dense store: interleave `pack` consecutive batch rows into one
        # 128-lane wide row, i.e. out_wide[j, r*out+c] = h[pack*j + r, c]
        # (== h.reshape(tm//pack, pack*out) in row-major order). Implemented
        # with strided sublane reads from a VMEM scratch plus static
        # lane-window stores so the HBM writeback DMA is fully dense.
        rows, out_dim = h.shape
        h_sc[...] = h.astype(o_ref.dtype)
        for r in range(pack):
            piece = h_sc[pl.ds(r, rows // pack, stride=pack), :]
            o_ref[:, r * out_dim:(r + 1) * out_dim] = piece


def mlps_forward(x, params, *, max_tm: int = 1024):
    """Forward pass matching MLPs.forward: Linear -> ReLU -> ... -> Linear.

    x:      (batch, in_dim)
    params: list of (W (in_dim, out_dim), b (1, out_dim)) -- see init_mlps_params.
    """
    n_layers = len(params)
    m, in_dim = x.shape
    out_dim = params[-1][0].shape[1]

    # Only pad the batch to a multiple of 8 sublanes, and only when needed.
    # Ragged last grid blocks are masked by Pallas: rows are independent, so
    # garbage tail rows can't contaminate valid rows and OOB writes are dropped.
    m_pad = _round_up(m, 8)
    if m_pad != m:
        x = jnp.pad(x, ((0, m_pad - m), (0, 0)))

    # Lane-dense output packing factor: fold `pack` rows into one wide row.
    if out_dim < 128 and 128 % out_dim == 0:
        pack = min(8, 128 // out_dim)      # out_dim=16 -> pack=8 -> 128 lanes exactly
    else:
        pack = 1

    # Batch tile: one block for tiny batches; otherwise a multiple of 64 (keeps
    # both the (tm, in) and (tm//pack, pack*out) blocks sublane-aligned), capped
    # at max_tm and at ~half the batch so the grid always has >= 2 steps for
    # large batches (both v7x TensorCores get work; no-op on v5e/v6e).
    if m_pad <= 64:
        tm = m_pad
    else:
        tm = min(_round_up((m_pad + 1) // 2, 64), _round_up(max_tm, 64))
    grid = (pl.cdiv(m_pad, tm),)

    in_specs = [pl.BlockSpec((tm, in_dim), lambda i: (i, 0))]
    flat_args = [x]
    for (w, b) in params:
        # Grid-invariant block index -> DMA'd once, stays VMEM-resident.
        # (Tiny at these dims; with much larger hidden dims, tile K/N instead
        #  of holding every layer's weights resident simultaneously.)
        in_specs.append(pl.BlockSpec(w.shape, lambda i: (0, 0)))
        in_specs.append(pl.BlockSpec(b.shape, lambda i: (0, 0)))
        flat_args.extend((w, b))

    out_shape = jax.ShapeDtypeStruct((m_pad // pack, pack * out_dim), x.dtype)
    out_specs = pl.BlockSpec((tm // pack, pack * out_dim), lambda i: (i, 0))

    scratch_shapes = []
    if pack > 1:
        scratch_shapes.append(pltpu.VMEM((tm, out_dim), x.dtype))

    # Advisory cost for XLA's scheduler.
    dims = [in_dim] + [w.shape[1] for (w, _) in params]
    flops = sum(2 * m_pad * dims[i] * dims[i + 1] for i in range(n_layers))
    bytes_accessed = (x.size * x.dtype.itemsize
                      + sum(w.size * w.dtype.itemsize + b.size * b.dtype.itemsize
                            for (w, b) in params)
                      + m_pad * out_dim * x.dtype.itemsize)

    kernel = functools.partial(_fused_mlp_kernel, n_layers=n_layers, pack=pack)
    out = pl.pallas_call(
        kernel,
        out_shape=out_shape,
        grid=grid,
        in_specs=in_specs,
        out_specs=out_specs,
        scratch_shapes=scratch_shapes,
        compiler_params=pltpu.CompilerParams(
            dimension_semantics=("parallel",)),
        cost_estimate=pl.CostEstimate(flops=flops, transcendentals=0,
                                      bytes_accessed=bytes_accessed),
    )(*flat_args)

    out = out.reshape(m_pad, out_dim)   # free row-major view of the packed layout
    if m_pad != m:
        out = out[:m]
    return out


def init_mlps_params(key, in_dim, mlps, *, weight_dtype=jnp.bfloat16,
                     bias_dtype=jnp.float32):
    """nn.Linear-style init: U(-1/sqrt(fan_in), 1/sqrt(fan_in)) for W and b.

    Weights are stored transposed vs. PyTorch ((in, out)) and, by default, in
    bf16 (native MXU input dtype on v5e/v6e/v7x). Biases stay f32 (bias-add and
    ReLU run in f32 inside the kernel) and are pre-shaped (1, out)."""
    params = []
    d_in = in_dim
    for out_dim in mlps:
        key, kw, kb = jax.random.split(key, 3)
        bound = float(d_in) ** -0.5
        w = jax.random.uniform(kw, (d_in, out_dim), dtype=jnp.float32,
                               minval=-bound, maxval=bound).astype(weight_dtype)
        b = jax.random.uniform(kb, (1, out_dim), dtype=jnp.float32,
                               minval=-bound, maxval=bound).astype(bias_dtype)
        params.append((w, b))
        d_in = out_dim
    return params


def _reference_forward(x, params):
    """Pure-JAX reference with the same numerics (bf16 weights, f32 accumulate)."""
    h = x.astype(jnp.float32)
    n_layers = len(params)
    for i, (w, b) in enumerate(params):
        h = jnp.dot(h.astype(w.dtype), w, preferred_element_type=jnp.float32)
        h = h + b.astype(jnp.float32)
        if i != n_layers - 1:
            h = jnp.maximum(h, 0.0)
    return h.astype(x.dtype)


if __name__ == "__main__":
    key = jax.random.PRNGKey(0)
    batch, in_dim = 8, 32
    mlps = [64, 48, 16]

    key, kx = jax.random.split(key)
    x = jax.random.normal(kx, (batch, in_dim), dtype=jnp.float32)
    params = init_mlps_params(key, in_dim, mlps)

    out = jax.block_until_ready(mlps_forward(x, params))
    ref = _reference_forward(x, params)
    assert out.shape == (batch, mlps[-1])
    assert jnp.allclose(out, ref, atol=1e-2, rtol=1e-2), \
        float(jnp.max(jnp.abs(out - ref)))

    # Also exercise the multi-tile grid path (>= 2 steps, ragged last block).
    key, kx2 = jax.random.split(key)
    x2 = jax.random.normal(kx2, (1000, in_dim), dtype=jnp.float32)
    out2 = jax.block_until_ready(mlps_forward(x2, params))
    ref2 = _reference_forward(x2, params)
    assert out2.shape == (1000, mlps[-1])
    assert jnp.allclose(out2, ref2, atol=1e-2, rtol=1e-2), \
        float(jnp.max(jnp.abs(out2 - ref2)))

    print("KERNEL_OK")
</pallas_src>

<mosaic_0001>
module attributes {stable_mosaic.version = 11 : i64} {
  func.func @_fused_mlp_kernel(%arg0: i32, %arg1: memref<8x32xf32, #tpu.memory_space<vmem>>, %arg2: memref<32x64xbf16, #tpu.memory_space<vmem>>, %arg3: memref<1x64xf32, #tpu.memory_space<vmem>>, %arg4: memref<64x48xbf16, #tpu.memory_space<vmem>>, %arg5: memref<1x48xf32, #tpu.memory_space<vmem>>, %arg6: memref<48x16xbf16, #tpu.memory_space<vmem>>, %arg7: memref<1x16xf32, #tpu.memory_space<vmem>>, %arg8: memref<1x128xf32, #tpu.memory_space<vmem>>, %arg9: memref<8x16xf32, #tpu.memory_space<vmem>>) attributes {dimension_semantics = [#tpu.dimension_semantics<parallel>], iteration_bounds = array<i64: 1>, scalar_prefetch = 0 : i64, scratch_operands = 1 : i64, tpu.core_type = #tpu.core_type<tc>, window_params = [{transform_indices = @transform_0, window_bounds = array<i64: 8, 32>}, {pipeline_mode = #tpu.pipeline_mode<synchronous>, transform_indices = @transform_1, window_bounds = array<i64: 32, 64>}, {pipeline_mode = #tpu.pipeline_mode<synchronous>, transform_indices = @transform_2, window_bounds = array<i64: 1, 64>}, {pipeline_mode = #tpu.pipeline_mode<synchronous>, transform_indices = @transform_3, window_bounds = array<i64: 64, 48>}, {pipeline_mode = #tpu.pipeline_mode<synchronous>, transform_indices = @transform_4, window_bounds = array<i64: 1, 48>}, {pipeline_mode = #tpu.pipeline_mode<synchronous>, transform_indices = @transform_5, window_bounds = array<i64: 48, 16>}, {pipeline_mode = #tpu.pipeline_mode<synchronous>, transform_indices = @transform_6, window_bounds = array<i64: 1, 16>}, {transform_indices = @transform_7, window_bounds = array<i64: 1, 128>}]} {
    %c0 = arith.constant 0 : index
    %c0_0 = arith.constant 0 : index
    %0 = vector.load %arg1[%c0, %c0_0] : memref<8x32xf32, #tpu.memory_space<vmem>>, vector<8x32xf32>
    %1 = arith.truncf %0 : vector<8x32xf32> to vector<8x32xbf16>
    %c0_1 = arith.constant 0 : index
    %c0_2 = arith.constant 0 : index
    %2 = vector.load %arg2[%c0_1, %c0_2] : memref<32x64xbf16, #tpu.memory_space<vmem>>, vector<32x64xbf16>
    %cst = arith.constant dense<0.000000e+00> : vector<8x64xf32>
    %3 = tpu.matmul %1, %2, %cst {dimension_numbers = #tpu.dot_dimension_numbers<[1], [0], [0], [1], [0, 0, 1, 1], [], []>} : vector<8x32xbf16>, vector<32x64xbf16>, vector<8x64xf32> -> vector<8x64xf32>
    %c0_3 = arith.constant 0 : index
    %c0_4 = arith.constant 0 : index
    %4 = vector.load %arg3[%c0_3, %c0_4] : memref<1x64xf32, #tpu.memory_space<vmem>>, vector<1x64xf32>
    %5 = vector.broadcast %4 : vector<1x64xf32> to vector<8x64xf32>
    %6 = arith.addf %3, %5 : vector<8x64xf32>
    %cst_5 = arith.constant 0.000000e+00 : f32
    %7 = vector.broadcast %cst_5 : f32 to vector<8x64xf32>
    %8 = arith.maximumf %6, %7 : vector<8x64xf32>
    %9 = arith.truncf %8 : vector<8x64xf32> to vector<8x64xbf16>
    %c0_6 = arith.constant 0 : index
    %c0_7 = arith.constant 0 : index
    %10 = vector.load %arg4[%c0_6, %c0_7] : memref<64x48xbf16, #tpu.memory_space<vmem>>, vector<64x48xbf16>
    %cst_8 = arith.constant dense<0.000000e+00> : vector<8x48xf32>
    %11 = tpu.matmul %9, %10, %cst_8 {dimension_numbers = #tpu.dot_dimension_numbers<[1], [0], [0], [1], [0, 0, 1, 1], [], []>} : vector<8x64xbf16>, vector<64x48xbf16>, vector<8x48xf32> -> vector<8x48xf32>
    %c0_9 = arith.constant 0 : index
    %c0_10 = arith.constant 0 : index
    %12 = vector.load %arg5[%c0_9, %c0_10] : memref<1x48xf32, #tpu.memory_space<vmem>>, vector<1x48xf32>
    %13 = vector.broadcast %12 : vector<1x48xf32> to vector<8x48xf32>
    %14 = arith.addf %11, %13 : vector<8x48xf32>
    %cst_11 = arith.constant 0.000000e+00 : f32
    %15 = vector.broadcast %cst_11 : f32 to vector<8x48xf32>
    %16 = arith.maximumf %14, %15 : vector<8x48xf32>
    %17 = arith.truncf %16 : vector<8x48xf32> to vector<8x48xbf16>
    %c0_12 = arith.constant 0 : index
    %c0_13 = arith.constant 0 : index
    %18 = vector.load %arg6[%c0_12, %c0_13] : memref<48x16xbf16, #tpu.memory_space<vmem>>, vector<48x16xbf16>
    %cst_14 = arith.constant dense<0.000000e+00> : vector<8x16xf32>
    %19 = tpu.matmul %17, %18, %cst_14 {dimension_numbers = #tpu.dot_dimension_numbers<[1], [0], [0], [1], [0, 0, 1, 1], [], []>} : vector<8x48xbf16>, vector<48x16xbf16>, vector<8x16xf32> -> vector<8x16xf32>
    %c0_15 = arith.constant 0 : index
    %c0_16 = arith.constant 0 : index
    %20 = vector.load %arg7[%c0_15, %c0_16] : memref<1x16xf32, #tpu.memory_space<vmem>>, vector<1x16xf32>
    %21 = vector.broadcast %20 : vector<1x16xf32> to vector<8x16xf32>
    %22 = arith.addf %19, %21 : vector<8x16xf32>
    %c0_17 = arith.constant 0 : index
    %c0_18 = arith.constant 0 : index
    %23 = vector.load %arg9[%c0_17, %c0_18] : memref<8x16xf32, #tpu.memory_space<vmem>>, vector<8x16xf32>
    tpu.vector_store %arg9[%c0_17, %c0_18], %22 {strides = array<i32>} : memref<8x16xf32, #tpu.memory_space<vmem>>, vector<8x16xf32>,
    %c0_19 = arith.constant 0 : index
    %c0_20 = arith.constant 0 : index
    %24 = tpu.strided_load %arg9[%c0_19, %c0_20] {strides = array<i32: 8, 1>} : memref<8x16xf32, #tpu.memory_space<vmem>>, vector<1x16xf32>
    %c0_21 = arith.constant 0 : index
    %c0_22 = arith.constant 0 : index
    %25 = vector.load %arg8[%c0_21, %c0_22] : memref<1x128xf32, #tpu.memory_space<vmem>>, vector<1x16xf32>
    tpu.vector_store %arg8[%c0_21, %c0_22], %24 {strides = array<i32>} : memref<1x128xf32, #tpu.memory_space<vmem>>, vector<1x16xf32>,
    %c1 = arith.constant 1 : index
    %c0_23 = arith.constant 0 : index
    %26 = tpu.strided_load %arg9[%c1, %c0_23] {strides = array<i32: 8, 1>} : memref<8x16xf32, #tpu.memory_space<vmem>>, vector<1x16xf32>
    %c0_24 = arith.constant 0 : index
    %c16 = arith.constant 16 : index
    %27 = vector.load %arg8[%c0_24, %c16] : memref<1x128xf32, #tpu.memory_space<vmem>>, vector<1x16xf32>
    tpu.vector_store %arg8[%c0_24, %c16], %26 {strides = array<i32>} : memref<1x128xf32, #tpu.memory_space<vmem>>, vector<1x16xf32>,
    %c2 = arith.constant 2 : index
    %c0_25 = arith.constant 0 : index
    %28 = tpu.strided_load %arg9[%c2, %c0_25] {strides = array<i32: 8, 1>} : memref<8x16xf32, #tpu.memory_space<vmem>>, vector<1x16xf32>
    %c0_26 = arith.constant 0 : index
    %c32 = arith.constant 32 : index
    %29 = vector.load %arg8[%c0_26, %c32] : memref<1x128xf32, #tpu.memory_space<vmem>>, vector<1x16xf32>
    tpu.vector_store %arg8[%c0_26, %c32], %28 {strides = array<i32>} : memref<1x128xf32, #tpu.memory_space<vmem>>, vector<1x16xf32>,
    %c3 = arith.constant 3 : index
    %c0_27 = arith.constant 0 : index
    %30 = tpu.strided_load %arg9[%c3, %c0_27] {strides = array<i32: 8, 1>} : memref<8x16xf32, #tpu.memory_space<vmem>>, vector<1x16xf32>
    %c0_28 = arith.constant 0 : index
    %c48 = arith.constant 48 : index
    %31 = vector.load %arg8[%c0_28, %c48] : memref<1x128xf32, #tpu.memory_space<vmem>>, vector<1x16xf32>
    tpu.vector_store %arg8[%c0_28, %c48], %30 {strides = array<i32>} : memref<1x128xf32, #tpu.memory_space<vmem>>, vector<1x16xf32>,
    %c4 = arith.constant 4 : index
    %c0_29 = arith.constant 0 : index
    %32 = tpu.strided_load %arg9[%c4, %c0_29] {strides = array<i32: 8, 1>} : memref<8x16xf32, #tpu.memory_space<vmem>>, vector<1x16xf32>
    %c0_30 = arith.constant 0 : index
    %c64 = arith.constant 64 : index
    %33 = vector.load %arg8[%c0_30, %c64] : memref<1x128xf32, #tpu.memory_space<vmem>>, vector<1x16xf32>
    tpu.vector_store %arg8[%c0_30, %c64], %32 {strides = array<i32>} : memref<1x128xf32, #tpu.memory_space<vmem>>, vector<1x16xf32>,
    %c5 = arith.constant 5 : index
    %c0_31 = arith.constant 0 : index
    %34 = tpu.strided_load %arg9[%c5, %c0_31] {strides = array<i32: 8, 1>} : memref<8x16xf32, #tpu.memory_space<vmem>>, vector<1x16xf32>
    %c0_32 = arith.constant 0 : index
    %c80 = arith.constant 80 : index
    %35 = vector.load %arg8[%c0_32, %c80] : memref<1x128xf32, #tpu.memory_space<vmem>>, vector<1x16xf32>
    tpu.vector_store %arg8[%c0_32, %c80], %34 {strides = array<i32>} : memref<1x128xf32, #tpu.memory_space<vmem>>, vector<1x16xf32>,
    %c6 = arith.constant 6 : index
    %c0_33 = arith.constant 0 : index
    %36 = tpu.strided_load %arg9[%c6, %c0_33] {strides = array<i32: 8, 1>} : memref<8x16xf32, #tpu.memory_space<vmem>>, vector<1x16xf32>
    %c0_34 = arith.constant 0 : index
    %c96 = arith.constant 96 : index
    %37 = vector.load %arg8[%c0_34, %c96] : memref<1x128xf32, #tpu.memory_space<vmem>>, vector<1x16xf32>
    tpu.vector_store %arg8[%c0_34, %c96], %36 {strides = array<i32>} : memref<1x128xf32, #tpu.memory_space<vmem>>, vector<1x16xf32>,
    %c7 = arith.constant 7 : index
    %c0_35 = arith.constant 0 : index
    %38 = tpu.strided_load %arg9[%c7, %c0_35] {strides = array<i32: 8, 1>} : memref<8x16xf32, #tpu.memory_space<vmem>>, vector<1x16xf32>
    %c0_36 = arith.constant 0 : index
    %c112 = arith.constant 112 : index
    %39 = vector.load %arg8[%c0_36, %c112] : memref<1x128xf32, #tpu.memory_space<vmem>>, vector<1x16xf32>
    tpu.vector_store %arg8[%c0_36, %c112], %38 {strides = array<i32>} : memref<1x128xf32, #tpu.memory_space<vmem>>, vector<1x16xf32>,
    return
  }
  func.func @transform_0(%arg0: i32) -> (i32, i32) {
    %c0_i32 = arith.constant 0 : i32
    %c0_i32_0 = arith.constant 0 : i32
    return %arg0, %c0_i32 : i32, i32
  }
  func.func @transform_1(%arg0: i32) -> (i32, i32) {
    %c0_i32 = arith.constant 0 : i32
    %c0_i32_0 = arith.constant 0 : i32
    %c0_i32_1 = arith.constant 0 : i32
    return %c0_i32, %c0_i32_0 : i32, i32
  }
  func.func @transform_2(%arg0: i32) -> (i32, i32) {
    %c0_i32 = arith.constant 0 : i32
    %c0_i32_0 = arith.constant 0 : i32
    %c0_i32_1 = arith.constant 0 : i32
    return %c0_i32, %c0_i32_0 : i32, i32
  }
  func.func @transform_3(%arg0: i32) -> (i32, i32) {
    %c0_i32 = arith.constant 0 : i32
    %c0_i32_0 = arith.constant 0 : i32
    %c0_i32_1 = arith.constant 0 : i32
    return %c0_i32, %c0_i32_0 : i32, i32
  }
  func.func @transform_4(%arg0: i32) -> (i32, i32) {
    %c0_i32 = arith.constant 0 : i32
    %c0_i32_0 = arith.constant 0 : i32
    %c0_i32_1 = arith.constant 0 : i32
    return %c0_i32, %c0_i32_0 : i32, i32
  }
  func.func @transform_5(%arg0: i32) -> (i32, i32) {
    %c0_i32 = arith.constant 0 : i32
    %c0_i32_0 = arith.constant 0 : i32
    %c0_i32_1 = arith.constant 0 : i32
    return %c0_i32, %c0_i32_0 : i32, i32
  }
  func.func @transform_6(%arg0: i32) -> (i32, i32) {
    %c0_i32 = arith.constant 0 : i32
    %c0_i32_0 = arith.constant 0 : i32
    %c0_i32_1 = arith.constant 0 : i32
    return %c0_i32, %c0_i32_0 : i32, i32
  }
  func.func @transform_7(%arg0: i32) -> (i32, i32) {
    %c0_i32 = arith.constant 0 : i32
    %c0_i32_0 = arith.constant 0 : i32
    return %arg0, %c0_i32 : i32, i32
  }
}

</mosaic_0001>

<llo_original>
// kernel: tpu_custom_call.1
$region0: #{tpu_custom_call.1}
  #allocation0 [shape = 'u32[]', space=smem, size = 0x4, offset = 0x4, fixed_abs, tag = 'smem constant byte address 0x4 - core index']
  #allocation1 [shape = 'u32[72,128]{1,0:T(1,128)}', space=vmem, size = 0x9000, scoped, tag = 'internal scratch']
  #allocation2 [shape = 'f32[8,16]{1,0:T(8,128)}', space=vmem, size = 0x1000, scoped, tag = 'scratch operand']
  %s0 = inlined_call_operand.vmem [shape: f32[8,32], index: 0, kind: input, shape index: {}]
  %s1 = inlined_call_operand.vmem [shape: bf16[32,64], index: 1, kind: input, shape index: {}]
  %s2 = inlined_call_operand.vmem [shape: f32[1,64], index: 2, kind: input, shape index: {}]
  %s3 = inlined_call_operand.vmem [shape: bf16[64,48], index: 3, kind: input, shape index: {}]
  %s4 = inlined_call_operand.vmem [shape: f32[1,48], index: 4, kind: input, shape index: {}]
  %s5 = inlined_call_operand.vmem [shape: bf16[48,16], index: 5, kind: input, shape index: {}]
  %s6 = inlined_call_operand.vmem [shape: f32[1,16], index: 6, kind: input, shape index: {}]
  %s7 = inlined_call_operand.hbm [shape: f32[1,128], index: 7, kind: output, shape index: {}]
  %s8 = sld [smem:[#allocation0]]
  $region38: #{tpu_custom_call.1} parent=0
    _
  %s10 = ssub.s32 1, %s8
  %s11 = scalar_select 0, %s10, %s8
  $region1: #{tpu_custom_call.1} parent=0
    #allocation3 [shape = 'u8[512]{0}', space=vmem, size = 0x400, scoped, tag = 'output window, operand 0, single buffered']
    #allocation4 [shape = 's32[1]{0}', space=sflag, size = 0x4, scoped, tag = 'scoped memory for tpu_custom_call.1']
    %12 = vsyncpa [#allocation4], 0
    // Predicated region
    $region2: #{tpu_custom_call.1} parent=1 // pred_check
      _
    $region3: #{tpu_custom_call.1} parent=1 // pred_check_branch
      %14 = sbr.rel (0) target = $region5
    $region4: #{tpu_custom_call.1} parent=1 // pred_region
      _
    $region5: #{tpu_custom_call.1} parent=1 // pred_fallthru
      _
    // Predicated region
    $region6: #{tpu_custom_call.1} parent=1 // pred_check
      _
    $region7: #{tpu_custom_call.1} parent=1 // pred_check_branch
      %16 = sbr.rel (0) target = $region9
    $region8: #{tpu_custom_call.1} parent=1 // pred_region
      _
    $region9: #{tpu_custom_call.1} parent=1 // pred_fallthru
      _
    // Predicated region
    $region10: #{tpu_custom_call.1} parent=1 // pred_check
      _
    $region11: #{tpu_custom_call.1} parent=1 // pred_check_branch
      %18 = sbr.rel (0) target = $region13
    $region12: #{tpu_custom_call.1} parent=1 // pred_region
      _
    $region13: #{tpu_custom_call.1} parent=1 // pred_fallthru
      _
    // Predicated region
    $region14: #{tpu_custom_call.1} parent=1 // pred_check
      _
    $region15: #{tpu_custom_call.1} parent=1 // pred_check_branch
      %20 = sbr.rel (0) target = $region17
    $region16: #{tpu_custom_call.1} parent=1 // pred_region
      _
    $region17: #{tpu_custom_call.1} parent=1 // pred_fallthru
      _
    // Predicated region
    $region18: #{tpu_custom_call.1} parent=1 // pred_check
      _
    $region19: #{tpu_custom_call.1} parent=1 // pred_check_branch
      %22 = sbr.rel (0) target = $region21
    $region20: #{tpu_custom_call.1} parent=1 // pred_region
      _
    $region21: #{tpu_custom_call.1} parent=1 // pred_fallthru
      _
    // Predicated region
    $region22: #{tpu_custom_call.1} parent=1 // pred_check
      _
    $region23: #{tpu_custom_call.1} parent=1 // pred_check_branch
      %24 = sbr.rel (0) target = $region25
    $region24: #{tpu_custom_call.1} parent=1 // pred_region
      _
    $region25: #{tpu_custom_call.1} parent=1 // pred_fallthru
      _
    // Predicated region
    $region26: #{tpu_custom_call.1} parent=1 // pred_check
      _
    $region27: #{tpu_custom_call.1} parent=1 // pred_check_branch
      %26 = sbr.rel (0) target = $region29
    $region28: #{tpu_custom_call.1} parent=1 // pred_region
      _
    $region29: #{tpu_custom_call.1} parent=1 // pred_fallthru
      _
    %v28 = vld [vmem:[%s0] sm:$0xff]
    %v29 = vpack.c.bf16 %v28, %v28
    %v30 = vld [vmem:[%s1] sm:$0xf]
    %v31 = vld [vmem:[%s1 + $0x4] sm:$0xf]
    %v32 = vld [vmem:[%s1 + $0x8] sm:$0xf]
    %v33 = vld [vmem:[%s1 + $0xc] sm:$0xf]
    %v34 = vld [vmem:[%s2] sm:$0x1]
    %v36 = vperm.slane %v34, 0
    %v42 = vunpack.c.l.b16 %v30
    %v43 = vunpack.c.l.b16 %v31
    %v44 = vunpack.c.l.b16 %v32
    %v45 = vunpack.c.l.b16 %v33
    %v46 = vpack.c.b16 %v43, %v42
    %v47 = vpack.c.b16 %v45, %v44
    %vm50 = vcmask 261120
    %v52 = vsel %vm50, %v29, 0
    %54 = vmatpush.bf16.msra.mxu0 0
    %55 = vmatpush.bf16.msra.mxu0 0
    %56 = vmatpush.bf16.msra.mxu0 0
    %57 = vmatpush.bf16.msra.mxu0 0
    %58 = vmatpush.bf16.msra.mxu0 0
    %59 = vmatpush.bf16.msra.mxu0 0
    %60 = vmatpush.bf16.msra.mxu0 %v47
    %61 = vmatpush.bf16.msra.mxu0 %v46
    %62 = vmatmul.bf16.gmra.mxu0 %v52
    %v63 = vpop.f32.mrf.mxu0
    %v64 = vadd.f32 %v36, %v63
    %v65 = vpop.f32.mrf.mxu0
    %66 = vdwg.mxu0
    %v67 = vmax.f32 %v64, 0.0
    %v68 = vpack.c.bf16 %v67, %v67
    %v69 = vld [vmem:[%s3] sm:$0xf]
    %v70 = vld [vmem:[%s3 + $0x4] sm:$0xf]
    %v71 = vld [vmem:[%s3 + $0x8] sm:$0xf]
    %v72 = vld [vmem:[%s3 + $0xc] sm:$0xf]
    %v73 = vld [vmem:[%s3 + $0x10] sm:$0xf]
    %v74 = vld [vmem:[%s3 + $0x14] sm:$0xf]
    %v75 = vld [vmem:[%s3 + $0x18] sm:$0xf]
    %v76 = vld [vmem:[%s3 + $0x1c] sm:$0xf]
    %v77 = vld [vmem:[%s4] sm:$0x1]
    %v79 = vperm.slane %v77, 0
    %v89 = vunpack.c.l.b16 %v69
    %v90 = vunpack.c.l.b16 %v70
    %v91 = vunpack.c.l.b16 %v71
    %v92 = vunpack.c.l.b16 %v72
    %v93 = vunpack.c.l.b16 %v73
    %v94 = vunpack.c.l.b16 %v74
    %v95 = vunpack.c.l.b16 %v75
    %v96 = vunpack.c.l.b16 %v76
    %v97 = vpack.c.b16 %v90, %v89
    %v98 = vpack.c.b16 %v92, %v91
    %v99 = vpack.c.b16 %v94, %v93
    %v100 = vpack.c.b16 %v96, %v95
    %vm105 = vcmask 523264
    %v107 = vsel %vm105, %v68, 0
    %109 = vmatpush.bf16.msra.mxu0 0
    %110 = vmatpush.bf16.msra.mxu0 0
    %111 = vmatpush.bf16.msra.mxu0 0
    %112 = vmatpush.bf16.msra.mxu0 0
    %113 = vmatpush.bf16.msra.mxu0 %v100
    %114 = vmatpush.bf16.msra.mxu0 %v99
    %115 = vmatpush.bf16.msra.mxu0 %v98
    %116 = vmatpush.bf16.msra.mxu0 %v97
    %117 = vmatmul.bf16.gmra.mxu0 %v107
    %v118 = vpop.f32.mrf.mxu0
    %v119 = vadd.f32 %v79, %v118
    %v120 = vpop.f32.mrf.mxu0
    %121 = vdwg.mxu0
    %v122 = vmax.f32 %v119, 0.0
    %v123 = vpack.c.bf16 %v122, %v122
    %v124 = vld [vmem:[%s5] sm:$0xf]
    %v125 = vld [vmem:[%s5 + $0x4] sm:$0xf]
    %v126 = vld [vmem:[%s5 + $0x8] sm:$0xf]
    %v127 = vld [vmem:[%s5 + $0xc] sm:$0xf]
    %v128 = vld [vmem:[%s5 + $0x10] sm:$0xf]
    %v129 = vld [vmem:[%s5 + $0x14] sm:$0xf]
    %v130 = vld [vmem:[%s6] sm:$0x1]
    %v132 = vperm.slane %v130, 0
    %v140 = vunpack.c.l.b16 %v124
    %v141 = vunpack.c.l.b16 %v125
    %v142 = vunpack.c.l.b16 %v126
    %v143 = vunpack.c.l.b16 %v127
    %v144 = vunpack.c.l.b16 %v128
    %v145 = vunpack.c.l.b16 %v129
    %v146 = vpack.c.b16 %v141, %v140
    %v147 = vpack.c.b16 %v143, %v142
    %v148 = vpack.c.b16 %v145, %v144
    %vm152 = vcmask 392192
    %v154 = vsel %vm152, %v123, 0
    %156 = vmatpush.bf16.msra.mxu0 0
    %157 = vmatpush.bf16.msra.mxu0 0
    %158 = vmatpush.bf16.msra.mxu0 0
    %159 = vmatpush.bf16.msra.mxu0 0
    %160 = vmatpush.bf16.msra.mxu0 0
    %161 = vmatpush.bf16.msra.mxu0 %v148
    %162 = vmatpush.bf16.msra.mxu0 %v147
    %163 = vmatpush.bf16.msra.mxu0 %v146
    %164 = vmatmul.bf16.gmra.mxu0 %v154
    %v165 = vpop.f32.mrf.mxu0
    %v166 = vadd.f32 %v132, %v165
    %v167 = vpop.f32.mrf.mxu0
    %168 = vdwg.mxu0
    %vm169 = vcmask 130048
    %170 = vst.msk [vmem:[#allocation2] sm:$0xff] %vm169, %v166
    %v171 = vld [vmem:[#allocation2] ss:$8 sm:$0x1]
    %vm172 = vcmask 122880
    %173 = vst.msk [vmem:[#allocation3] sm:$0x1] %vm172, %v171
    %s174 = scalar_lea.vmem [#allocation2], 1
    %v175 = vld [vmem:[%s174] ss:$8 sm:$0x1]
    %177 = vrot.lane.b32.xlu0 %v175, 16
    %v178 = vpop.permute.xlu0 %177
    %vm180 = vcmask 254080
    %181 = vst.msk [vmem:[#allocation3] sm:$0x1] %vm180, %v178
    %s182 = scalar_lea.vmem [#allocation2], 2
    %v183 = vld [vmem:[%s182] ss:$8 sm:$0x1]
    %185 = vrot.lane.b32.xlu0 %v183, 32
    %v186 = vpop.permute.xlu0 %185
    %vm188 = vcmask 385280
    %189 = vst.msk [vmem:[#allocation3] sm:$0x1] %vm188, %v186
    %s190 = scalar_lea.vmem [#allocation2], 3
    %v191 = vld [vmem:[%s190] ss:$8 sm:$0x1]
    %193 = vrot.lane.b32.xlu0 %v191, 48
    %v194 = vpop.permute.xlu0 %193
    %vm196 = vcmask 516480
    %197 = vst.msk [vmem:[#allocation3] sm:$0x1] %vm196, %v194
    %s198 = scalar_lea.vmem [#allocation2], 4
    %v199 = vld [vmem:[%s198] ss:$8 sm:$0x1]
    %201 = vrot.lane.b32.xlu0 %v199, 64
    %v202 = vpop.permute.xlu0 %201
    %vm204 = vcmask 647680
    %205 = vst.msk [vmem:[#allocation3] sm:$0x1] %vm204, %v202
    %s206 = scalar_lea.vmem [#allocation2], 5
    %v207 = vld [vmem:[%s206] ss:$8 sm:$0x1]
    %209 = vrot.lane.b32.xlu0 %v207, 80
    %v210 = vpop.permute.xlu0 %209
    %vm212 = vcmask 778880
    %213 = vst.msk [vmem:[#allocation3] sm:$0x1] %vm212, %v210
    %s214 = scalar_lea.vmem [#allocation2], 6
    %v215 = vld [vmem:[%s214] ss:$8 sm:$0x1]
    %217 = vrot.lane.b32.xlu0 %v215, 96
    %v218 = vpop.permute.xlu0 %217
    %vm220 = vcmask 910080
    %221 = vst.msk [vmem:[#allocation3] sm:$0x1] %vm220, %v218
    %s222 = scalar_lea.vmem [#allocation2], 7
    %v223 = vld [vmem:[%s222] ss:$8 sm:$0x1]
    %225 = vrot.lane.b32.xlu0 %v223, 112
    %v226 = vpop.permute.xlu0 %225
    %vm228 = vcmask 1041280
    %229 = vst.msk [vmem:[#allocation3] sm:$0x1] %vm228, %v226
    // Predicated region
    $region30: #{tpu_custom_call.1} parent=1 // pred_check
      _
    $region31: #{tpu_custom_call.1} parent=1 // pred_check_branch
      %231 = sbr.rel (0) target = $region33
    $region32: #{tpu_custom_call.1} parent=1 // pred_region
      %233 = vsyncadd [#allocation4], 0
      %s235 = sshll.u32 [#allocation3], 4
      %s236 = int_to_ptr.vmem [resolvable:$true] %s235
      %s237 = sshll.u32 %s7, 4
      %s238 = int_to_ptr.hbm [resolvable:$true] %s237
      %240 = dma.vmem_to_hbm [thread:$0]  %s236, 16, %s238, [#allocation4]
    $region33: #{tpu_custom_call.1} parent=1 // pred_fallthru
      _
    // Predicated region
    $region34: #{tpu_custom_call.1} parent=1 // pred_check
      _
    $region35: #{tpu_custom_call.1} parent=1 // pred_check_branch
      %242 = sbr.rel (0) target = $region37
    $region36: #{tpu_custom_call.1} parent=1 // pred_region
      %244 = dma.done [#allocation4], 16
    $region37: #{tpu_custom_call.1} parent=1 // pred_fallthru
      _
    %245 = vsyncpa [#allocation4], 1

</llo_original>
